<compile_context>
chip_gen: v6e
topology: v6e:2x2x1
jax: 0.10.0
libtpu: 0.0.40
codegen_flags: <defaults>
</compile_context>

<pallas_src>
import functools

import jax
import jax.numpy as jnp
from jax.experimental import pallas as pl
from jax.experimental.pallas import tpu as pltpu

_EPS = 1e-6  # matches torch F.pairwise_distance default eps


def _contrastive_kernel(o1_ref, o2_ref, lab_ref, out_ref, *, margin, batch, tile):
    i = pl.program_id(0)
    last = pl.num_programs(0) - 1

    # Upcast in-kernel (free VPU casts) -- inputs arrive in native dtype.
    o1 = o1_ref[...].astype(jnp.float32)                      # (TB, D)
    o2 = o2_ref[...].astype(jnp.float32)                      # (TB, D)

    # F.pairwise_distance(p=2): ||x1 - x2 + eps||_2 per row.
    diff = o1 - o2 + _EPS                                     # (TB, D)
    sq = jnp.sum(diff * diff, axis=-1, keepdims=True)         # (TB, 1)
    e_d = jnp.sqrt(sq)                                        # (TB, 1)

    lab = lab_ref[...]                                        # (TB, 1) f32
    hinge = jnp.maximum(margin - e_d, 0.0)                    # clamp(m - d, 0)
    per_row = (1.0 - lab) * sq + lab * (hinge * hinge)        # (TB, 1)

    # Interior tiles: plain reduce, no mask / iota.
    @pl.when(i < last)
    def _():
        out_ref[...] = jnp.sum(per_row).reshape(1, 1, 1)

    # Last (possibly partial) tile: zero out padded tail rows before reducing.
    @pl.when(i == last)
    def _():
        row = jax.lax.broadcasted_iota(jnp.int32, per_row.shape, 0) + i * tile
        masked = jnp.where(row < batch, per_row, 0.0)
        out_ref[...] = jnp.sum(masked).reshape(1, 1, 1)


def _round_up(x, m):
    return ((x + m - 1) // m) * m


def _vmem_budget_and_limit():
    """Generation-aware scoped-VMEM limit and double-buffered working-set budget."""
    cap = None
    try:
        cap = int(pltpu.get_tpu_info().vmem_capacity_bytes)
    except Exception:
        cap = None
    if not cap or cap <= 0:
        cap = 64 * 1024 * 1024  # conservative fallback: v7x per-TC physical VMEM
    # Leave headroom for Mosaic's own scratch; cap the request at 100 MiB.
    limit = min(int(cap * 0.75), 100 * 1024 * 1024)
    budget = int(limit * 0.60)
    return budget, limit


def _choose_tile_rows(batch, d, itemsize, vmem_budget_bytes):
    """Largest batch tile (multiple of 8) whose double-buffered, lane-padded
    working set (2 inputs x 2 buffers + label blocks + tiny partial-sum out)
    fits the VMEM budget; guarantees >= 2 grid steps when the batch allows."""
    if batch < 8:
        return int(batch)  # block == full array dims -> always layout-legal
    d_pad = _round_up(d, 128)                       # lane padding of input blocks
    input_bytes_per_row = 2 * 2 * d_pad * itemsize  # 2 inputs x 2 buffers
    label_bytes_per_row = 2 * 128 * 4               # (TB,1) f32 lane-pads to 128, x2 buffers
    per_row = input_bytes_per_row + label_bytes_per_row
    fixed = 2 * 8 * 128 * 4                         # (1,1,1) partial-sum out blocks, padded
    tb = max(8, (vmem_budget_bytes - fixed) // per_row)
    if batch >= 16:
        # Keep >= 2 grid steps so the "parallel" axis shards across both v7x TCs.
        tb = min(tb, _round_up(pl.cdiv(batch, 2), 8))
    tb = min(tb, _round_up(batch, 8))               # never larger than the (padded) array
    tb = max(8, (tb // 8) * 8)
    return int(tb)


def contrastive_loss(output1, output2, label, margin):
    """Pallas TPU implementation of ContrastiveLoss.forward."""
    B, D = output1.shape
    itemsize = output1.dtype.itemsize
    lab2 = label.reshape(B, 1).astype(jnp.float32)  # tiny; negligible traffic

    budget, vmem_limit = _vmem_budget_and_limit()
    TB = _choose_tile_rows(B, D, itemsize, budget)
    G = pl.cdiv(B, TB)

    kernel = functools.partial(
        _contrastive_kernel, margin=float(margin), batch=B, tile=TB)

    bytes_accessed = (output1.size + output2.size) * itemsize + B * 4 + G * 4

    partials = pl.pallas_call(
        kernel,
        out_shape=jax.ShapeDtypeStruct((G, 1, 1), jnp.float32),
        grid=(G,),
        in_specs=[
            pl.BlockSpec((TB, D), lambda i: (i, 0)),
            pl.BlockSpec((TB, D), lambda i: (i, 0)),
            pl.BlockSpec((TB, 1), lambda i: (i, 0)),
        ],
        out_specs=pl.BlockSpec((1, 1, 1), lambda i: (i, 0, 0)),
        compiler_params=pltpu.CompilerParams(
            dimension_semantics=("parallel",),
            vmem_limit_bytes=int(vmem_limit)),
        cost_estimate=pl.CostEstimate(
            flops=4 * output1.size + 8 * B,
            transcendentals=B,
            bytes_accessed=int(bytes_accessed)),
    )(output1, output2, lab2)

    # Padded tail rows were zeroed in-kernel; divide by the true batch size.
    return jnp.sum(partials) / B


def _reference(output1, output2, label, margin):
    o1 = output1.astype(jnp.float32)
    o2 = output2.astype(jnp.float32)
    diff = o1 - o2 + _EPS
    e_d = jnp.sqrt(jnp.sum(diff * diff, axis=-1))
    hinge = jnp.maximum(margin - e_d, 0.0)
    return jnp.mean((1.0 - label) * e_d**2 + label * hinge**2)


if __name__ == "__main__":
    margin = 1.0

    # Test 1: small f32 case (single tile).
    k1, k2, k3 = jax.random.split(jax.random.PRNGKey(0), 3)
    B, D = 8, 32
    output1 = jax.random.normal(k1, (B, D), dtype=jnp.float32)
    output2 = jax.random.normal(k2, (B, D), dtype=jnp.float32)
    label = jax.random.bernoulli(k3, 0.5, (B,)).astype(jnp.float32)

    loss = contrastive_loss(output1, output2, label, margin)
    jax.block_until_ready(loss)
    ref = _reference(output1, output2, label, margin)
    assert jnp.allclose(loss, ref, rtol=1e-5, atol=1e-5), (loss, ref)

    # Test 2: bf16 inputs, batch not a multiple of the tile (exercises the
    # native-dtype path, the 2-step grid clamp and tail-row masking).
    k4, k5, k6 = jax.random.split(jax.random.PRNGKey(1), 3)
    B2, D2 = 20, 32
    o1b = jax.random.normal(k4, (B2, D2), dtype=jnp.bfloat16)
    o2b = jax.random.normal(k5, (B2, D2), dtype=jnp.bfloat16)
    labb = jax.random.bernoulli(k6, 0.5, (B2,)).astype(jnp.float32)

    loss2 = contrastive_loss(o1b, o2b, labb, margin)
    jax.block_until_ready(loss2)
    ref2 = _reference(o1b, o2b, labb, margin)
    assert jnp.allclose(loss2, ref2, rtol=1e-4, atol=1e-4), (loss2, ref2)

    print("KERNEL_OK")
</pallas_src>

<mosaic_0001>
module attributes {stable_mosaic.version = 11 : i64} {
  func.func @_contrastive_kernel(%arg0: i32, %arg1: memref<8x32xf32, #tpu.memory_space<vmem>>, %arg2: memref<8x32xf32, #tpu.memory_space<vmem>>, %arg3: memref<8x1xf32, #tpu.memory_space<vmem>>, %arg4: memref<1x1x1xf32, #tpu.memory_space<vmem>>) attributes {dimension_semantics = [#tpu.dimension_semantics<parallel>], iteration_bounds = array<i64: 1>, scalar_prefetch = 0 : i64, scratch_operands = 0 : i64, tpu.core_type = #tpu.core_type<tc>, window_params = [{transform_indices = @transform_0, window_bounds = array<i64: 8, 32>}, {transform_indices = @transform_1, window_bounds = array<i64: 8, 32>}, {transform_indices = @transform_2, window_bounds = array<i64: 8, 1>}, {transform_indices = @transform_3, window_bounds = array<i64: 1, 1, 1>}]} {
    %c0 = arith.constant 0 : index
    %c0_0 = arith.constant 0 : index
    %0 = vector.load %arg1[%c0, %c0_0] : memref<8x32xf32, #tpu.memory_space<vmem>>, vector<8x32xf32>
    %c0_1 = arith.constant 0 : index
    %c0_2 = arith.constant 0 : index
    %1 = vector.load %arg2[%c0_1, %c0_2] : memref<8x32xf32, #tpu.memory_space<vmem>>, vector<8x32xf32>
    %2 = arith.subf %0, %1 : vector<8x32xf32>
    %cst = arith.constant 9.99999997E-7 : f32
    %3 = vector.broadcast %cst : f32 to vector<8x32xf32>
    %4 = arith.addf %2, %3 : vector<8x32xf32>
    %5 = arith.mulf %4, %4 : vector<8x32xf32>
    %cst_3 = arith.constant dense<0.000000e+00> : vector<8xf32>
    %6 = vector.multi_reduction <add>, %5, %cst_3 [1] : vector<8x32xf32> to vector<8xf32>
    %7 = vector.shape_cast %6 : vector<8xf32> to vector<8x1xf32>
    %8 = math.sqrt %7 : vector<8x1xf32>
    %c0_4 = arith.constant 0 : index
    %c0_5 = arith.constant 0 : index
    %9 = vector.load %arg3[%c0_4, %c0_5] : memref<8x1xf32, #tpu.memory_space<vmem>>, vector<8x1xf32>
    %cst_6 = arith.constant 1.000000e+00 : f32
    %10 = vector.broadcast %cst_6 : f32 to vector<8x1xf32>
    %11 = arith.subf %10, %8 : vector<8x1xf32>
    %cst_7 = arith.constant 0.000000e+00 : f32
    %12 = vector.broadcast %cst_7 : f32 to vector<8x1xf32>
    %13 = arith.maximumf %11, %12 : vector<8x1xf32>
    %cst_8 = arith.constant 1.000000e+00 : f32
    %14 = vector.broadcast %cst_8 : f32 to vector<8x1xf32>
    %15 = arith.subf %14, %9 : vector<8x1xf32>
    %16 = arith.mulf %15, %7 : vector<8x1xf32>
    %17 = arith.mulf %13, %13 : vector<8x1xf32>
    %18 = arith.mulf %9, %17 : vector<8x1xf32>
    %19 = arith.addf %16, %18 : vector<8x1xf32>
    %c0_i32 = arith.constant 0 : i32
    %20 = arith.cmpi slt, %arg0, %c0_i32 : i32
    %21 = arith.extui %20 : i1 to i32
    %c0_i32_9 = arith.constant 0 : i32
    %22 = arith.cmpi ne, %21, %c0_i32_9 : i32
    scf.if %22 {
      %26 = vector.shape_cast %19 : vector<8x1xf32> to vector<1x8x1xf32>
      %cst_12 = arith.constant dense<0.000000e+00> : vector<1xf32>
      %27 = vector.multi_reduction <add>, %26, %cst_12 [1, 2] : vector<1x8x1xf32> to vector<1xf32>
      %28 = vector.shape_cast %27 : vector<1xf32> to vector<1x1x1xf32>
      %29 = vector.extract %28[0, 0, 0] : f32 from vector<1x1x1xf32>
      %30 = vector.broadcast %29 : f32 to vector<1x1x1xf32>
      %c0_13 = arith.constant 0 : index
      %c0_14 = arith.constant 0 : index
      %c0_15 = arith.constant 0 : index
      %31 = vector.load %arg4[%c0_13, %c0_14, %c0_15] : memref<1x1x1xf32, #tpu.memory_space<vmem>>, vector<1x1x1xf32>
      tpu.vector_store %arg4[%c0_13, %c0_14, %c0_15], %30 {strides = array<i32>} : memref<1x1x1xf32, #tpu.memory_space<vmem>>, vector<1x1x1xf32>,
    } else {
    }
    %c0_i32_10 = arith.constant 0 : i32
    %23 = arith.cmpi eq, %arg0, %c0_i32_10 : i32
    %24 = arith.extui %23 : i1 to i32
    %c0_i32_11 = arith.constant 0 : i32
    %25 = arith.cmpi ne, %24, %c0_i32_11 : i32
    scf.if %25 {
      %26 = tpu.iota {dimensions = array<i32: 0>} : vector<8x1xi32>
      %c8_i32 = arith.constant 8 : i32
      %27 = arith.muli %arg0, %c8_i32 : i32
      %28 = vector.broadcast %27 : i32 to vector<8x1xi32>
      %29 = arith.addi %26, %28 : vector<8x1xi32>
      %c8_i32_12 = arith.constant 8 : i32
      %30 = vector.broadcast %c8_i32_12 : i32 to vector<8x1xi32>
      %31 = arith.cmpi slt, %29, %30 : vector<8x1xi32>
      %cst_13 = arith.constant 0.000000e+00 : f32
      %32 = vector.broadcast %cst_13 : f32 to vector<8x1xf32>
      %33 = arith.select %31, %19, %32 : vector<8x1xi1>, vector<8x1xf32>
      %34 = vector.shape_cast %33 : vector<8x1xf32> to vector<1x8x1xf32>
      %cst_14 = arith.constant dense<0.000000e+00> : vector<1xf32>
      %35 = vector.multi_reduction <add>, %34, %cst_14 [1, 2] : vector<1x8x1xf32> to vector<1xf32>
      %36 = vector.shape_cast %35 : vector<1xf32> to vector<1x1x1xf32>
      %37 = vector.extract %36[0, 0, 0] : f32 from vector<1x1x1xf32>
      %38 = vector.broadcast %37 : f32 to vector<1x1x1xf32>
      %c0_15 = arith.constant 0 : index
      %c0_16 = arith.constant 0 : index
      %c0_17 = arith.constant 0 : index
      %39 = vector.load %arg4[%c0_15, %c0_16, %c0_17] : memref<1x1x1xf32, #tpu.memory_space<vmem>>, vector<1x1x1xf32>
      tpu.vector_store %arg4[%c0_15, %c0_16, %c0_17], %38 {strides = array<i32>} : memref<1x1x1xf32, #tpu.memory_space<vmem>>, vector<1x1x1xf32>,
    } else {
    }
    return
  }
  func.func @transform_0(%arg0: i32) -> (i32, i32) {
    %c0_i32 = arith.constant 0 : i32
    %c0_i32_0 = arith.constant 0 : i32
    return %arg0, %c0_i32 : i32, i32
  }
  func.func @transform_1(%arg0: i32) -> (i32, i32) {
    %c0_i32 = arith.constant 0 : i32
    %c0_i32_0 = arith.constant 0 : i32
    return %arg0, %c0_i32 : i32, i32
  }
  func.func @transform_2(%arg0: i32) -> (i32, i32) {
    %c0_i32 = arith.constant 0 : i32
    %c0_i32_0 = arith.constant 0 : i32
    return %arg0, %c0_i32 : i32, i32
  }
  func.func @transform_3(%arg0: i32) -> (i32, i32, i32) {
    %c0_i32 = arith.constant 0 : i32
    %c0_i32_0 = arith.constant 0 : i32
    %c0_i32_1 = arith.constant 0 : i32
    return %arg0, %c0_i32, %c0_i32_0 : i32, i32, i32
  }
}

</mosaic_0001>

<llo_original>
// kernel: tpu_custom_call.1
$region0: #{tpu_custom_call.1}
  #allocation0 [shape = 'u32[]', space=smem, size = 0x4, offset = 0x4, fixed_abs, tag = 'smem constant byte address 0x4 - core index']
  #allocation1 [shape = 'u32[144,128]{1,0:T(1,128)}', space=vmem, size = 0x12000, scoped, tag = 'internal scratch']
  %s0 = inlined_call_operand.vmem [shape: f32[8,32], index: 0, kind: input, shape index: {}]
  %s1 = inlined_call_operand.hbm [shape: f32[8,32], index: 1, kind: input, shape index: {}]
  %s2 = inlined_call_operand.vmem [shape: f32[8,1], index: 2, kind: input, shape index: {}]
  %s3 = inlined_call_operand.hbm [shape: f32[1,1,1], index: 3, kind: output, shape index: {}]
  %s4 = sld [smem:[#allocation0]]
  $region34: #{tpu_custom_call.1} parent=0
    _
  %s6 = ssub.s32 1, %s4
  %s7 = scalar_select 0, %s6, %s4
  $region1: #{tpu_custom_call.1} parent=0
    #allocation2 [shape = 'u8[4096]{0}', space=vmem, size = 0x1000, scoped, tag = 'input window, operand 1, single buffered']
    #allocation3 [shape = 's32[1]{0}', space=sflag, size = 0x4, scoped, tag = 'scoped memory for tpu_custom_call.1']
    #allocation4 [shape = 's32[1]{0}', space=sflag, size = 0x4, scoped, tag = 'scoped memory for tpu_custom_call.1']
    #allocation5 [shape = 'u8[512]{0}', space=vmem, size = 0x400, scoped, tag = 'output window, operand 0, single buffered']
    %8 = vsyncpa [#allocation3], 0
    %9 = vsyncpa [#allocation4], 0
    // Predicated region
    $region2: #{tpu_custom_call.1} parent=1 // pred_check
      _
    $region3: #{tpu_custom_call.1} parent=1 // pred_check_branch
      %11 = sbr.rel (0) target = $region5
    $region4: #{tpu_custom_call.1} parent=1 // pred_region
      _
    $region5: #{tpu_custom_call.1} parent=1 // pred_fallthru
      _
    // Predicated region
    $region6: #{tpu_custom_call.1} parent=1 // pred_check
      _
    $region7: #{tpu_custom_call.1} parent=1 // pred_check_branch
      %13 = sbr.rel (0) target = $region9
    $region8: #{tpu_custom_call.1} parent=1 // pred_region
      %s15 = ssub.s32 128, 128
      %16 = vsyncadd [#allocation3], %s15
      %s18 = sshll.u32 [#allocation2], 4
      %s19 = int_to_ptr.vmem [resolvable:$true] %s18
      %21 = dma.hbm_to_vmem [thread:$0]  %s1, 128, %s19, [#allocation3]
    $region9: #{tpu_custom_call.1} parent=1 // pred_fallthru
      _
    // Predicated region
    $region10: #{tpu_custom_call.1} parent=1 // pred_check
      _
    $region11: #{tpu_custom_call.1} parent=1 // pred_check_branch
      %23 = sbr.rel (0) target = $region13
    $region12: #{tpu_custom_call.1} parent=1 // pred_region
      _
    $region13: #{tpu_custom_call.1} parent=1 // pred_fallthru
      _
    // Predicated region
    $region14: #{tpu_custom_call.1} parent=1 // pred_check
      _
    $region15: #{tpu_custom_call.1} parent=1 // pred_check_branch
      %25 = sbr.rel (0) target = $region17
    $region16: #{tpu_custom_call.1} parent=1 // pred_region
      %26 = dma.done [#allocation3], 128
    $region17: #{tpu_custom_call.1} parent=1 // pred_fallthru
      _
    %v27 = vld [vmem:[%s0] sm:$0xff]
    %v28 = vld [vmem:[#allocation2] sm:$0xff]
    %v29 = vsub.f32 %v27, %v28
    %v30 = vadd.f32 %v29, 1e-06
    %v31 = vmul.f32 %v30, %v30
    %vm32 = vcmask 261120
    %v33 = vsel %vm32, %v31, 0.0
    %34 = vadd.xlane.f32.xlu0 %v33
    %v35 = vpop.xlane.xlu0 %34
    %v36 = vrsqrt.pop %v35
    %v37 = vmul.f32 %v35, %v36
    %vm38 = vcmp.eq.f32.partialorder %v35, inf
    %v39 = vsel %vm38, %v35, %v37
    %vm40 = vcmp.eq.f32.partialorder %v35, 0.0
    %v41 = vand.u32 %v35, 2147483648
    %v42 = vsel %vm40, %v41, %v39
    %v43 = vld [vmem:[%s2] sm:$0xff]
    %v44 = vsub.f32 1.0, %v42
    %v45 = vmax.f32 %v44, 0.0
    %v46 = vsub.f32 1.0, %v43
    %v47 = vmul.f32 %v46, %v35
    %v48 = vmul.f32 %v45, %v45
    %v49 = vmul.f32 %v43, %v48
    %v50 = vadd.f32 %v47, %v49
    %p51 = scmp.lt.s32.totalorder 0, 0
    // Predicated region
    $region18: #{tpu_custom_call.1} parent=1 // pred_check
      %p52 = pneg %p51
    $region19: #{tpu_custom_call.1} parent=1 // pred_check_branch
      %54 = sbr.rel (%p52) target = $region21
    $region20: #{tpu_custom_call.1} parent=1 // pred_region
      %vm55 = vcmask 7168
      %v56 = vsel %vm55, %v50, 0.0
      %57 = vadd.xlane.f32.xlu0 %v56
      %v58 = vpop.xlane.xlu0 %57
      %v59 = vrot.slane %v58, 4
      %v60 = vadd.f32 %v58, %v59
      %v61 = vrot.slane %v60, 2
      %v62 = vadd.f32 %v60, %v61
      %v63 = vrot.slane %v62, 1
      %v64 = vadd.f32 %v62, %v63
      %s65 = vtos %v64
      %v66 = vstv %s65
      %vm67 = vcmask 0
      %68 = vst.msk [vmem:[#allocation5] sm:$0x1] %vm67, %v66
    $region21: #{tpu_custom_call.1} parent=1 // pred_fallthru
      _
    %p69 = scmp.eq.s32.totalorder 0, 0
    // Predicated region
    $region22: #{tpu_custom_call.1} parent=1 // pred_check
      %p70 = pneg %p69
    $region23: #{tpu_custom_call.1} parent=1 // pred_check_branch
      %72 = sbr.rel (%p70) target = $region25
    $region24: #{tpu_custom_call.1} parent=1 // pred_region
      %v73 = vlaneseq
      %v74 = vshrl.u32 %v73, 7
      %s75 = smul.u32 0, 8
      %v76 = vstv %s75
      %v77 = vadd.s32 %v74, %v76
      %vm78 = vcmp.lt.s32.totalorder %v77, 8
      %v79 = vsel %vm78, %v50, 0.0
      %vm80 = vcmask 7168
      %v81 = vsel %vm80, %v79, 0.0
      %82 = vadd.xlane.f32.xlu0 %v81
      %v83 = vpop.xlane.xlu0 %82
      %v84 = vrot.slane %v83, 4
      %v85 = vadd.f32 %v83, %v84
      %v86 = vrot.slane %v85, 2
      %v87 = vadd.f32 %v85, %v86
      %v88 = vrot.slane %v87, 1
      %v89 = vadd.f32 %v87, %v88
      %s90 = vtos %v89
      %v91 = vstv %s90
      %vm92 = vcmask 0
      %93 = vst.msk [vmem:[#allocation5] sm:$0x1] %vm92, %v91
    $region25: #{tpu_custom_call.1} parent=1 // pred_fallthru
      _
    // Predicated region
    $region26: #{tpu_custom_call.1} parent=1 // pred_check
      _
    $region27: #{tpu_custom_call.1} parent=1 // pred_check_branch
      %95 = sbr.rel (0) target = $region29
    $region28: #{tpu_custom_call.1} parent=1 // pred_region
      %s97 = ssub.s32 16, 16
      %98 = vsyncadd [#allocation4], %s97
      %s100 = sshll.u32 [#allocation5], 4
      %s101 = int_to_ptr.vmem [resolvable:$true] %s100
      %103 = dma.vmem_to_hbm [thread:$0]  %s101, 16, %s3, [#allocation4]
    $region29: #{tpu_custom_call.1} parent=1 // pred_fallthru
      _
    // Predicated region
    $region30: #{tpu_custom_call.1} parent=1 // pred_check
      _
    $region31: #{tpu_custom_call.1} parent=1 // pred_check_branch
      %105 = sbr.rel (0) target = $region33
    $region32: #{tpu_custom_call.1} parent=1 // pred_region
      %106 = dma.done [#allocation4], 16
    $region33: #{tpu_custom_call.1} parent=1 // pred_fallthru
      _
    %107 = vsyncpa [#allocation3], 1
    %108 = vsyncpa [#allocation4], 1

</llo_original>
